<compile_context>
chip_gen: v6e
topology: v6e:2x2x1
jax: 0.10.0
libtpu: 0.0.40
codegen_flags: <defaults>
</compile_context>

<pallas_src>
import jax
import jax.numpy as jnp
from jax.experimental import pallas as pl
from jax.experimental.pallas import tpu as pltpu


def conv1d_relu_kernel(xs_ref, w_ref, b_ref, out_ref):
    # xs_ref : (1, 1, TL+2, Cin) bf16  -- one sequence tile + 2-row halo
    # w_ref  : (3, Cin, Cout_p)  bf16  -- resident across the whole grid
    # b_ref  : (1, Cout_p)       f32
    # out_ref: (1, TL, Cout_p)   f32   -- lane-dense (Cout_p % 128 == 0)
    tl = out_ref.shape[1]
    x = xs_ref[0, 0]                                   # (TL+2, Cin)

    # k=3 taps as three shifted matmuls accumulated in f32.  The two shifted taps
    # are static sublane-offset views of the already-resident tile; per-tap K
    # stays = Cin (fusing into a (TL, 3*Cin) operand only pays when Cin << MXU
    # width and would cost a lane-concat relayout, so it is intentionally skipped).
    acc = jnp.dot(x[0:tl], w_ref[0], preferred_element_type=jnp.float32)
    acc = acc + jnp.dot(x[1:tl + 1], w_ref[1], preferred_element_type=jnp.float32)
    acc = acc + jnp.dot(x[2:tl + 2], w_ref[2], preferred_element_type=jnp.float32)

    acc = acc + b_ref[...]                             # (1, Cout_p) broadcast
    out_ref[0] = jnp.maximum(acc, 0.0).astype(out_ref.dtype)


def _vmem_capacity_bytes():
    try:
        return int(pltpu.get_tpu_info().vmem_capacity_bytes)
    except Exception:
        return 64 * 1024 * 1024          # conservative fallback (v7x per-TC VMEM)


def _choose_seq_tile(L, Cin, Cout_p, vmem_cap):
    """Largest sublane-aligned sequence tile whose double-buffered working set
    fits ~1/4 of VMEM (auto-scales: ~2x larger tiles on v5e/v6e than on v7x)."""
    per_row = 2 * (Cin * 2) + 2 * (Cout_p * 4)   # dbl-buffered bf16 in + f32 out
    fixed = 3 * Cin * Cout_p * 2 + Cout_p * 4    # resident weight + bias
    budget = vmem_cap // 4
    tl = (budget - fixed) // per_row
    tl = max(8, min(tl, 1024))                   # cap keeps per-step latency short
    l8 = ((L + 7) // 8) * 8
    tl = min(tl, l8)
    return max(8, (tl // 8) * 8)


def cnn_layer_forward(x, weight, bias):
    """x: (B, L, Cin) f32; weight: (Cout, Cin, 3) [PyTorch layout]; bias: (Cout,)."""
    B, L, Cin = x.shape
    Cout = weight.shape[0]
    Cout_p = ((Cout + 127) // 128) * 128         # lane-dense output stores

    vmem_cap = _vmem_capacity_bytes()
    TL = _choose_seq_tile(L, Cin, Cout_p, vmem_cap)
    NT = pl.cdiv(L, TL)
    L_tot = NT * TL

    # Parameters: (Cout, Cin, 3) -> (3, Cin, Cout_p); padded Cout columns are zero
    # so the extra lanes stay exactly 0 through bias+ReLU and are safely stripped.
    w = jnp.transpose(weight.astype(jnp.float32), (2, 1, 0))          # (3, Cin, Cout)
    w = jnp.pad(w, ((0, 0), (0, 0), (0, Cout_p - Cout))).astype(jnp.bfloat16)
    b = jnp.pad(bias.astype(jnp.float32), (0, Cout_p - Cout)).reshape(1, Cout_p)

    # Single prep pass: pad the conv halo, de-overlap the sequence into per-tile
    # (TL+2)-row slabs, cast to bf16.
    # NOTE: this could be removed entirely with an in-kernel pl.ANY + manual
    # make_async_copy halo pipeline; kept host-side for robustness.
    x_pad = jnp.pad(x.astype(jnp.float32), ((0, 0), (1, 1 + L_tot - L), (0, 0)))
    idx = (jnp.arange(NT) * TL)[:, None] + jnp.arange(TL + 2)[None, :]
    x_slab = jnp.take(x_pad, idx, axis=1).astype(jnp.bfloat16)   # (B, NT, TL+2, Cin)

    cost = pl.CostEstimate(
        flops=int(2 * B * L_tot * 3 * Cin * Cout_p),
        transcendentals=0,
        bytes_accessed=int(x_slab.size * 2 + w.size * 2 + b.size * 4
                           + B * L_tot * Cout_p * 4),
    )

    out = pl.pallas_call(
        conv1d_relu_kernel,
        out_shape=jax.ShapeDtypeStruct((B, L_tot, Cout_p), jnp.float32),
        grid=(B, NT),
        in_specs=[
            pl.BlockSpec((1, 1, TL + 2, Cin), lambda bi, ti: (bi, ti, 0, 0)),
            pl.BlockSpec((3, Cin, Cout_p), lambda bi, ti: (0, 0, 0)),
            pl.BlockSpec((1, Cout_p), lambda bi, ti: (0, 0)),
        ],
        out_specs=pl.BlockSpec((1, TL, Cout_p), lambda bi, ti: (bi, ti, 0)),
        compiler_params=pltpu.CompilerParams(
            dimension_semantics=("parallel", "parallel"),
            vmem_limit_bytes=int(min(vmem_cap // 2, 64 * 1024 * 1024)),
        ),
        cost_estimate=cost,
    )(x_slab, w, b)

    # Strip the Cout lane padding and any sequence-length rounding.
    return out[:, :L, :Cout]


def _reference(x, weight, bias):
    """Pure-JAX f32 reference of the PyTorch forward (Conv1d k=3 pad=1 + ReLU)."""
    x_pad = jnp.pad(x, ((0, 0), (1, 1), (0, 0)))
    L = x.shape[1]
    out = bias[None, None, :]
    for k in range(3):
        out = out + jnp.einsum('blc,oc->blo', x_pad[:, k:k + L, :], weight[:, :, k])
    return jnp.maximum(out, 0.0)


if __name__ == "__main__":
    B, L = 2, 8
    input_dim, hidden_dim = 4, 32

    key = jax.random.PRNGKey(0)
    kx, kw, kb = jax.random.split(key, 3)

    # Deterministic parameter init (PyTorch-like uniform bound = 1/sqrt(fan_in*k))
    bound = 1.0 / (input_dim * 3) ** 0.5
    weight = jax.random.uniform(kw, (hidden_dim, input_dim, 3),
                                minval=-bound, maxval=bound, dtype=jnp.float32)
    bias = jax.random.uniform(kb, (hidden_dim,),
                              minval=-bound, maxval=bound, dtype=jnp.float32)
    x = jax.random.normal(kx, (B, L, input_dim), dtype=jnp.float32)

    out = jax.block_until_ready(cnn_layer_forward(x, weight, bias))
    ref = _reference(x, weight, bias)

    assert out.shape == (B, L, hidden_dim)
    # bf16 MXU operands with f32 accumulation -> loosened tolerance vs f32 reference.
    assert jnp.allclose(out, ref, atol=5e-2, rtol=5e-2), \
        float(jnp.max(jnp.abs(out - ref)))

    print("KERNEL_OK")
</pallas_src>

<mosaic_0001>
module attributes {stable_mosaic.version = 11 : i64} {
  func.func @conv1d_relu_kernel(%arg0: i32, %arg1: i32, %arg2: memref<1x1x10x4xbf16, #tpu.memory_space<vmem>>, %arg3: memref<3x4x128xbf16, #tpu.memory_space<vmem>>, %arg4: memref<1x128xf32, #tpu.memory_space<vmem>>, %arg5: memref<1x8x128xf32, #tpu.memory_space<vmem>>) attributes {dimension_semantics = [#tpu.dimension_semantics<parallel>, #tpu.dimension_semantics<parallel>], iteration_bounds = array<i64: 2, 1>, scalar_prefetch = 0 : i64, scratch_operands = 0 : i64, tpu.core_type = #tpu.core_type<tc>, window_params = [{transform_indices = @transform_0, window_bounds = array<i64: 1, 1, 10, 4>}, {pipeline_mode = #tpu.pipeline_mode<synchronous>, transform_indices = @transform_1, window_bounds = array<i64: 3, 4, 128>}, {pipeline_mode = #tpu.pipeline_mode<synchronous>, transform_indices = @transform_2, window_bounds = array<i64: 1, 128>}, {transform_indices = @transform_3, window_bounds = array<i64: 1, 8, 128>}]} {
    %c0 = arith.constant 0 : index
    %c0_0 = arith.constant 0 : index
    %c0_1 = arith.constant 0 : index
    %c0_2 = arith.constant 0 : index
    %0 = vector.load %arg2[%c0, %c0_0, %c0_1, %c0_2] : memref<1x1x10x4xbf16, #tpu.memory_space<vmem>>, vector<1x1x10x4xbf16>
    %1 = vector.shape_cast %0 : vector<1x1x10x4xbf16> to vector<10x4xbf16>
    %2 = vector.extract_strided_slice %1 {offsets = [0, 0], sizes = [8, 4], strides = [1, 1]} : vector<10x4xbf16> to vector<8x4xbf16>
    %c0_3 = arith.constant 0 : index
    %c0_4 = arith.constant 0 : index
    %c0_5 = arith.constant 0 : index
    %3 = vector.load %arg3[%c0_3, %c0_4, %c0_5] : memref<3x4x128xbf16, #tpu.memory_space<vmem>>, vector<1x4x128xbf16>
    %4 = vector.shape_cast %3 : vector<1x4x128xbf16> to vector<4x128xbf16>
    %cst = arith.constant dense<0.000000e+00> : vector<8x128xf32>
    %5 = tpu.matmul %2, %4, %cst {dimension_numbers = #tpu.dot_dimension_numbers<[1], [0], [0], [1], [0, 0, 1, 1], [], []>} : vector<8x4xbf16>, vector<4x128xbf16>, vector<8x128xf32> -> vector<8x128xf32>
    %6 = vector.extract_strided_slice %1 {offsets = [1, 0], sizes = [8, 4], strides = [1, 1]} : vector<10x4xbf16> to vector<8x4xbf16>
    %c1 = arith.constant 1 : index
    %c0_6 = arith.constant 0 : index
    %c0_7 = arith.constant 0 : index
    %7 = vector.load %arg3[%c1, %c0_6, %c0_7] : memref<3x4x128xbf16, #tpu.memory_space<vmem>>, vector<1x4x128xbf16>
    %8 = vector.shape_cast %7 : vector<1x4x128xbf16> to vector<4x128xbf16>
    %cst_8 = arith.constant dense<0.000000e+00> : vector<8x128xf32>
    %9 = tpu.matmul %6, %8, %cst_8 {dimension_numbers = #tpu.dot_dimension_numbers<[1], [0], [0], [1], [0, 0, 1, 1], [], []>} : vector<8x4xbf16>, vector<4x128xbf16>, vector<8x128xf32> -> vector<8x128xf32>
    %10 = arith.addf %5, %9 : vector<8x128xf32>
    %11 = vector.extract_strided_slice %1 {offsets = [2, 0], sizes = [8, 4], strides = [1, 1]} : vector<10x4xbf16> to vector<8x4xbf16>
    %c2 = arith.constant 2 : index
    %c0_9 = arith.constant 0 : index
    %c0_10 = arith.constant 0 : index
    %12 = vector.load %arg3[%c2, %c0_9, %c0_10] : memref<3x4x128xbf16, #tpu.memory_space<vmem>>, vector<1x4x128xbf16>
    %13 = vector.shape_cast %12 : vector<1x4x128xbf16> to vector<4x128xbf16>
    %cst_11 = arith.constant dense<0.000000e+00> : vector<8x128xf32>
    %14 = tpu.matmul %11, %13, %cst_11 {dimension_numbers = #tpu.dot_dimension_numbers<[1], [0], [0], [1], [0, 0, 1, 1], [], []>} : vector<8x4xbf16>, vector<4x128xbf16>, vector<8x128xf32> -> vector<8x128xf32>
    %15 = arith.addf %10, %14 : vector<8x128xf32>
    %c0_12 = arith.constant 0 : index
    %c0_13 = arith.constant 0 : index
    %16 = vector.load %arg4[%c0_12, %c0_13] : memref<1x128xf32, #tpu.memory_space<vmem>>, vector<1x128xf32>
    %17 = vector.broadcast %16 : vector<1x128xf32> to vector<8x128xf32>
    %18 = arith.addf %15, %17 : vector<8x128xf32>
    %cst_14 = arith.constant 0.000000e+00 : f32
    %19 = vector.broadcast %cst_14 : f32 to vector<8x128xf32>
    %20 = arith.maximumf %18, %19 : vector<8x128xf32>
    %c0_15 = arith.constant 0 : index
    %c0_16 = arith.constant 0 : index
    %c0_17 = arith.constant 0 : index
    %21 = vector.load %arg5[%c0_15, %c0_16, %c0_17] : memref<1x8x128xf32, #tpu.memory_space<vmem>>, vector<1x8x128xf32>
    %22 = vector.shape_cast %21 : vector<1x8x128xf32> to vector<8x128xf32>
    %23 = vector.shape_cast %20 : vector<8x128xf32> to vector<1x8x128xf32>
    tpu.vector_store %arg5[%c0_15, %c0_16, %c0_17], %23 {strides = array<i32>} : memref<1x8x128xf32, #tpu.memory_space<vmem>>, vector<1x8x128xf32>,
    return
  }
  func.func @transform_0(%arg0: i32, %arg1: i32) -> (i32, i32, i32, i32) {
    %c0_i32 = arith.constant 0 : i32
    %c0_i32_0 = arith.constant 0 : i32
    %c0_i32_1 = arith.constant 0 : i32
    return %arg0, %arg1, %c0_i32, %c0_i32_0 : i32, i32, i32, i32
  }
  func.func @transform_1(%arg0: i32, %arg1: i32) -> (i32, i32, i32) {
    %c0_i32 = arith.constant 0 : i32
    %c0_i32_0 = arith.constant 0 : i32
    %c0_i32_1 = arith.constant 0 : i32
    %c0_i32_2 = arith.constant 0 : i32
    return %c0_i32, %c0_i32_0, %c0_i32_1 : i32, i32, i32
  }
  func.func @transform_2(%arg0: i32, %arg1: i32) -> (i32, i32) {
    %c0_i32 = arith.constant 0 : i32
    %c0_i32_0 = arith.constant 0 : i32
    %c0_i32_1 = arith.constant 0 : i32
    return %c0_i32, %c0_i32_0 : i32, i32
  }
  func.func @transform_3(%arg0: i32, %arg1: i32) -> (i32, i32, i32) {
    %c0_i32 = arith.constant 0 : i32
    %c0_i32_0 = arith.constant 0 : i32
    return %arg0, %arg1, %c0_i32 : i32, i32, i32
  }
}

</mosaic_0001>

<llo_original>
// kernel: tpu_custom_call.1
$region0: #{tpu_custom_call.1}
  #allocation0 [shape = 'u32[]', space=smem, size = 0x4, offset = 0x4, fixed_abs, tag = 'smem constant byte address 0x4 - core index']
  #allocation1 [shape = 'u32[144,128]{1,0:T(1,128)}', space=vmem, size = 0x12000, scoped, tag = 'internal scratch']
  %s0 = inlined_call_operand.vmem [shape: bf16[2,1,10,4], index: 0, kind: input, shape index: {}]
  %s1 = inlined_call_operand.vmem [shape: bf16[3,4,128], index: 1, kind: input, shape index: {}]
  %s2 = inlined_call_operand.vmem [shape: f32[1,128], index: 2, kind: input, shape index: {}]
  %s3 = inlined_call_operand.hbm [shape: f32[2,8,128], index: 3, kind: output, shape index: {}]
  %s4 = sld [smem:[#allocation0]]
  $region45: #{tpu_custom_call.1} parent=0
    _
  %s6 = ssub.s32 1, %s4
  %s7 = scalar_select 0, %s6, %s4
  $region1: #{tpu_custom_call.1} parent=0
    #allocation2 [shape = 'u8[8192]{0}', space=vmem, size = 0x2000, scoped, tag = 'output window, operand 0']
    #allocation3 [shape = 's32[2]{0}', space=sflag, size = 0x8, scoped, tag = 'scoped memory for tpu_custom_call.1']
    %8 = vsyncpa [#allocation3], 0
    %s9 = scalar_lea.sflag [#allocation3], 1
    %10 = vsyncpa %s9, 0
    loop: start=0, step=1, limit=4
    $region2: #{tpu_custom_call.1} parent=1 // loop_pre_header
      _
    $region3: #{tpu_custom_call.1} parent=1 // loop_header
      %s12 = sphi 0, %s16
      %p13 = scmp.ge.s32.totalorder %s12, 4
      %s19 = sphi 0, %s31
      %s20 = sphi 0, %s27
      %s21 = sphi 0, %s19
      %s22 = sphi 0, %s20
      %s23 = sphi 0, %s21
      %s24 = sphi 0, %s22
      %s36 = sphi 0, %s38
      %s39 = sphi 0, %s36
      %s40 = sphi 0, %s39
      %s56 = sphi 0, %s40
      %s60 = sphi 0, %s60
      %s62 = sphi 0, %s60
      %s63 = sphi 0, %s62
      %s77 = sphi 0, %s63
      %s81 = sphi 0, %s81
      %s83 = sphi 0, %s81
      %s84 = sphi 0, %s83
      %s98 = sphi 0, %s84
      %s106 = sphi 0, %s108
      %s109 = sphi 0, %s106
      %s110 = sphi 0, %s109
      %s126 = sphi 0, %s110
    $region4: #{tpu_custom_call.1} parent=1 // loop_header_branch
      %15 = sbr.rel (%p13) target = $region8
    $region5: #{tpu_custom_call.1} parent=1 // loop_body
      %s17 = ssub.s32 %s12, 1
      %s18 = ssub.s32 %s12, 2
      %s25 = sadd.s32 1, %s20
      %p26 = scmp.ge.s32.totalorder %s25, 1
      %s27 = scalar_select %p26, 0, %s25
      %s28 = sadd.s32 1, %s19
      %s29 = scalar_select %p26, %s28, %s19
      %p30 = scmp.ge.s32.totalorder %s29, 2
      %s31 = scalar_select %p30, 0, %s29
      %s32 = ssub.s32 %s19, %s31
      %s33 = ssub.s32 %s20, %s27
      %s34 = sor.u32 %s32, %s33
      %p35 = scmp.eq.s32.totalorder %s34, 0
      %s37 = sadd.s32 %s36, 1
      %s38 = scalar_select %p35, %s36, %s37
      %p41 = pneg %p35
      %p42 = scmp.eq.s32.totalorder %s12, 1
      %p43 = por %p41, %p42
      %p44 = scmp.ne.s32.totalorder %s36, %s39
      %p45 = scmp.eq.s32.totalorder %s12, 0
      %p46 = por %p44, %p45
      %p47 = scmp.ne.s32.totalorder %s36, %s39
      %p48 = scmp.eq.s32.totalorder %s17, 1
      %p49 = por %p47, %p48
      %p50 = scmp.ne.s32.totalorder %s39, %s40
      %p51 = scmp.eq.s32.totalorder %s17, 0
      %p52 = por %p50, %p51
      %p53 = scmp.ne.s32.totalorder %s39, %s40
      %p54 = scmp.eq.s32.totalorder %s18, 1
      %p55 = por %p53, %p54
      %p57 = scmp.ne.s32.totalorder %s40, %s56
      %p58 = scmp.eq.s32.totalorder %s18, 0
      %p59 = por %p57, %p58
      %s61 = sadd.s32 %s60, 1
      %p64 = scmp.eq.s32.totalorder %s12, 1
      %p65 = scmp.ne.s32.totalorder %s60, %s62
      %p66 = scmp.eq.s32.totalorder %s12, 0
      %p67 = por %p65, %p66
      %p68 = scmp.ne.s32.totalorder %s60, %s62
      %p69 = scmp.eq.s32.totalorder %s17, 1
      %p70 = por %p68, %p69
      %p71 = scmp.ne.s32.totalorder %s62, %s63
      %p72 = scmp.eq.s32.totalorder %s17, 0
      %p73 = por %p71, %p72
      %p74 = scmp.ne.s32.totalorder %s62, %s63
      %p75 = scmp.eq.s32.totalorder %s18, 1
      %p76 = por %p74, %p75
      %p78 = scmp.ne.s32.totalorder %s63, %s77
      %p79 = scmp.eq.s32.totalorder %s18, 0
      %p80 = por %p78, %p79
      %s82 = sadd.s32 %s81, 1
      %p85 = scmp.eq.s32.totalorder %s12, 1
      %p86 = scmp.ne.s32.totalorder %s81, %s83
      %p87 = scmp.eq.s32.totalorder %s12, 0
      %p88 = por %p86, %p87
      %p89 = scmp.ne.s32.totalorder %s81, %s83
      %p90 = scmp.eq.s32.totalorder %s17, 1
      %p91 = por %p89, %p90
      %p92 = scmp.ne.s32.totalorder %s83, %s84
      %p93 = scmp.eq.s32.totalorder %s17, 0
      %p94 = por %p92, %p93
      %p95 = scmp.ne.s32.totalorder %s83, %s84
      %p96 = scmp.eq.s32.totalorder %s18, 1
      %p97 = por %p95, %p96
      %p99 = scmp.ne.s32.totalorder %s84, %s98
      %p100 = scmp.eq.s32.totalorder %s18, 0
      %p101 = por %p99, %p100
      %s102 = ssub.s32 %s19, %s31
      %s103 = ssub.s32 %s20, %s27
      %s104 = sor.u32 %s102, %s103
      %p105 = scmp.eq.s32.totalorder %s104, 0
      %s107 = sadd.s32 %s106, 1
      %s108 = scalar_select %p105, %s106, %s107
      %p111 = pneg %p105
      %p112 = scmp.eq.s32.totalorder %s12, 1
      %p113 = por %p111, %p112
      %p114 = scmp.ne.s32.totalorder %s106, %s109
      %p115 = scmp.eq.s32.totalorder %s12, 0
      %p116 = por %p114, %p115
      %p117 = scmp.ne.s32.totalorder %s106, %s109
      %p118 = scmp.eq.s32.totalorder %s17, 1
      %p119 = por %p117, %p118
      %p120 = scmp.ne.s32.totalorder %s109, %s110
      %p121 = scmp.eq.s32.totalorder %s17, 0
      %p122 = por %p120, %p121
      %p123 = scmp.ne.s32.totalorder %s109, %s110
      %p124 = scmp.eq.s32.totalorder %s18, 1
      %p125 = por %p123, %p124
      %p127 = scmp.ne.s32.totalorder %s110, %s126
      %p128 = scmp.eq.s32.totalorder %s18, 0
      %p129 = por %p127, %p128
      %p130 = scmp.le.s32.totalorder 1, %s12
      %p131 = scmp.lt.s32.totalorder %s12, 3
      %p132 = pnand %p130, %p131
      %p133 = pneg %p132
      // Predicated region
      $region9: #{tpu_custom_call.1} parent=5 // pred_check
        _
      $region10: #{tpu_custom_call.1} parent=5 // pred_check_branch
        %135 = sbr.rel (%p132) target = $region12
      $region11: #{tpu_custom_call.1} parent=5 // pred_region
        %s136 = ssub.s32 %s12, 1
        // Predicated region
        $region13: #{tpu_custom_call.1} parent=11 // pred_check
          %p137 = pneg %p73
        $region14: #{tpu_custom_call.1} parent=11 // pred_check_branch
          %139 = sbr.rel (%p137) target = $region16
        $region15: #{tpu_custom_call.1} parent=11 // pred_region
          _
        $region16: #{tpu_custom_call.1} parent=11 // pred_fallthru
          _
        // Predicated region
        $region17: #{tpu_custom_call.1} parent=11 // pred_check
          %p140 = pneg %p94
        $region18: #{tpu_custom_call.1} parent=11 // pred_check_branch
          %142 = sbr.rel (%p140) target = $region20
        $region19: #{tpu_custom_call.1} parent=11 // pred_region
          _
        $region20: #{tpu_custom_call.1} parent=11 // pred_fallthru
          _
      $region12: #{tpu_custom_call.1} parent=5 // pred_fallthru
        _
      %p143 = scmp.lt.s32.totalorder %s12, 2
      // Predicated region
      $region21: #{tpu_custom_call.1} parent=5 // pred_check
        %p144 = pneg %p143
      $region22: #{tpu_custom_call.1} parent=5 // pred_check_branch
        %146 = sbr.rel (%p144) target = $region24
      $region23: #{tpu_custom_call.1} parent=5 // pred_region
        // Predicated region
        $region25: #{tpu_custom_call.1} parent=23 // pred_check
          %p147 = pneg %p46
        $region26: #{tpu_custom_call.1} parent=23 // pred_check_branch
          %149 = sbr.rel (%p147) target = $region28
        $region27: #{tpu_custom_call.1} parent=23 // pred_region
          %p150 = scmp.lt.s32.totalorder %s19, 1
          %s151 = scalar_select %p150, %s19, 1
          %p152 = scmp.lt.s32.totalorder %s20, 0
          %s153 = scalar_select %p152, %s20, 0
          %s154 = smul.addr %s153, 2
          %s155 = smul.addr %s151, 2
          %s156 = sadd.s32 %s154, %s155
          %s157 = smul.addr %s156, 4
          %s158 = scalar_lea.vmem %s0, %s157
        $region28: #{tpu_custom_call.1} parent=23 // pred_fallthru
          _
      $region24: #{tpu_custom_call.1} parent=5 // pred_fallthru
        _
      %p159 = scmp.le.s32.totalorder 1, %s12
      %p160 = scmp.lt.s32.totalorder %s12, 3
      %p161 = pnand %p159, %p160
      %p162 = pneg %p161
      // Predicated region
      $region29: #{tpu_custom_call.1} parent=5 // pred_check
        _
      $region30: #{tpu_custom_call.1} parent=5 // pred_check_branch
        %164 = sbr.rel (%p161) target = $region32
      $region31: #{tpu_custom_call.1} parent=5 // pred_region
        %s165 = ssub.s32 %s12, 1
        %p166 = scmp.lt.s32.totalorder %s21, 1
        %s167 = scalar_select %p166, %s21, 1
        %p168 = scmp.lt.s32.totalorder %s22, 0
        %s169 = scalar_select %p168, %s22, 0
        %s170 = smul.addr %s169, 2
        %s171 = smul.addr %s167, 2
        %s172 = sadd.s32 %s170, %s171
        %s173 = smul.addr %s172, 4
        %s174 = scalar_lea.vmem %s0, %s173
        %p175 = pneg %p52
        %p176 = pneg %p49
        %p177 = pneg %p73
        %p178 = pneg %p70
        %p179 = pneg %p94
        %p180 = pneg %p91
        %p181 = pneg %p122
        %p182 = pneg %p119
        %s183 = sand.u32 %s109, 1
        %s184 = scalar_lea.sflag [#allocation3], %s183
        %s185 = sand.u32 %s109, 1
        %s186 = smul.addr %s185, 8
        %s187 = scalar_lea.vmem [#allocation2], %s186
        %p188 = scmp.lt.s32.totalorder %s21, 1
        %s189 = scalar_select %p188, %s21, 1
        %p190 = scmp.lt.s32.totalorder %s22, 0
        %s191 = scalar_select %p190, %s22, 0
        %s192 = smul.addr %s191, 2
        %s193 = smul.addr %s189, 2
        %s194 = sadd.s32 %s192, %s193
        %s195 = smul.addr %s194, 4
        %s196 = scalar_lea.vmem %s0, %s195
        %v198 = vld [vmem:[%s196] sm:$0xf]
        %v199 = vld [vmem:[%s196 + $0x4] sm:$0x1]
        %v200 = vld [vmem:[%s1] sm:$0x3]
        %s201 = scalar_lea.vmem %s1, 2
        %v202 = vld [vmem:[%s201] sm:$0x3]
        %v205 = vunpack.c.l.b16 %v198
        %v206 = vunpack.c.l.b16 %v199
        %v207 = vpack.c.b16 %v206, %v205
        %v209 = vshrl.u32 %v207, 16
        %v211 = vshll.u32 %v207, 16
        %v213 = vrot.slane %v211, 1
        %v214 = vor.u32 %v209, %v213
        %vm215 = vcmask 31744
        %v217 = vsel %vm215, %v214, 0
        %vm219 = vcmask 1041408
        %v221 = vsel %vm219, %v202, 0
        %223 = vmatprep.subr.bf16.mxu0 0
        %224 = vmatpush1.bf16.msra.mxu0 0
        %225 = vmatprep.subr.bf16.mxu0 0
        %226 = vmatpush1.bf16.msra.mxu0 0
        %227 = vmatprep.subr.bf16.mxu0 0
        %228 = vmatpush1.bf16.msra.mxu0 0
        %229 = vmatprep.subr.bf16.mxu0 0
        %230 = vmatpush1.bf16.msra.mxu0 0
        %231 = vmatprep.subr.bf16.mxu0 0
        %232 = vmatpush1.bf16.msra.mxu0 0
        %233 = vmatprep.subr.bf16.mxu0 0
        %234 = vmatpush1.bf16.msra.mxu0 0
        %235 = vmatprep.subr.bf16.mxu0 0
        %236 = vmatpush1.bf16.msra.mxu0 0
        %237 = vmatprep.subr.bf16.mxu0 0
        %238 = vmatpush1.bf16.msra.mxu0 %v221
        %239 = vmatprep.subr.bf16.mxu0 0
        %240 = vmatpush2.bf16.msra.mxu0 0
        %241 = vmatprep.subr.bf16.mxu0 0
        %242 = vmatpush2.bf16.msra.mxu0 0
        %243 = vmatprep.subr.bf16.mxu0 0
        %244 = vmatpush2.bf16.msra.mxu0 0
        %245 = vmatprep.subr.bf16.mxu0 0
        %246 = vmatpush2.bf16.msra.mxu0 0
        %247 = vmatprep.subr.bf16.mxu0 0
        %248 = vmatpush2.bf16.msra.mxu0 0
        %249 = vmatprep.subr.bf16.mxu0 0
        %250 = vmatpush2.bf16.msra.mxu0 0
        %251 = vmatprep.subr.bf16.mxu0 0
        %252 = vmatpush2.bf16.msra.mxu0 0
        %253 = vmatprep.subr.bf16.mxu0 0
        %254 = vmatpush2.bf16.msra.mxu0 0
        %255 = vmatprep.mubr.bf16.mxu0 0
        %256 = vmatmul.mubr.bf16.gmra.mxu0 %v217
        %v257 = vpop.f32.mrf.mxu0
        %v258 = vadd.f32 0.0, %v257
        %v259 = vpop.f32.mrf.mxu0
        %v260 = vpop.f32.mrf.mxu0
        %v261 = vpop.f32.mrf.mxu0
        %262 = vdwg.mxu0
        %v264 = vsel %vm215, %v198, 0
        %v267 = vsel %vm219, %v200, 0
        %269 = vmatprep.subr.bf16.mxu0 0
        %270 = vmatpush1.bf16.msra.mxu0 0
        %271 = vmatprep.subr.bf16.mxu0 0
        %272 = vmatpush1.bf16.msra.mxu0 0
        %273 = vmatprep.subr.bf16.mxu0 0
        %274 = vmatpush1.bf16.msra.mxu0 0
        %275 = vmatprep.subr.bf16.mxu0 0
        %276 = vmatpush1.bf16.msra.mxu0 0
        %277 = vmatprep.subr.bf16.mxu0 0
        %278 = vmatpush1.bf16.msra.mxu0 0
        %279 = vmatprep.subr.bf16.mxu0 0
        %280 = vmatpush1.bf16.msra.mxu0 0
        %281 = vmatprep.subr.bf16.mxu0 0
        %282 = vmatpush1.bf16.msra.mxu0 0
        %283 = vmatprep.subr.bf16.mxu0 0
        %284 = vmatpush1.bf16.msra.mxu0 %v267
        %285 = vmatprep.subr.bf16.mxu0 0
        %286 = vmatpush2.bf16.msra.mxu0 0
        %287 = vmatprep.subr.bf16.mxu0 0
        %288 = vmatpush2.bf16.msra.mxu0 0
        %289 = vmatprep.subr.bf16.mxu0 0
        %290 = vmatpush2.bf16.msra.mxu0 0
        %291 = vmatprep.subr.bf16.mxu0 0
        %292 = vmatpush2.bf16.msra.mxu0 0
        %293 = vmatprep.subr.bf16.mxu0 0
        %294 = vmatpush2.bf16.msra.mxu0 0
        %295 = vmatprep.subr.bf16.mxu0 0
        %296 = vmatpush2.bf16.msra.mxu0 0
        %297 = vmatprep.subr.bf16.mxu0 0
        %298 = vmatpush2.bf16.msra.mxu0 0
        %299 = vmatprep.subr.bf16.mxu0 0
        %300 = vmatpush2.bf16.msra.mxu0 0
        %301 = vmatprep.mubr.bf16.mxu0 0
        %302 = vmatmul.mubr.bf16.gmra.mxu0 %v264
        %v303 = vpop.f32.mrf.mxu0
        %v304 = vadd.f32 %v258, %v303
        %v305 = vpop.f32.mrf.mxu0
        %v306 = vpop.f32.mrf.mxu0
        %v307 = vpop.f32.mrf.mxu0
        %308 = vdwg.mxu0
        %s309 = scalar_lea.vmem %s1, 4
        %v310 = vld [vmem:[%s309] sm:$0x3]
        %v311 = vrot.slane %v207, 1
        %v313 = vsel %vm215, %v311, 0
        %v316 = vsel %vm219, %v310, 0
        %318 = vmatprep.subr.bf16.mxu0 0
        %319 = vmatpush1.bf16.msra.mxu0 0
        %320 = vmatprep.subr.bf16.mxu0 0
        %321 = vmatpush1.bf16.msra.mxu0 0
        %322 = vmatprep.subr.bf16.mxu0 0
        %323 = vmatpush1.bf16.msra.mxu0 0
        %324 = vmatprep.subr.bf16.mxu0 0
        %325 = vmatpush1.bf16.msra.mxu0 0
        %326 = vmatprep.subr.bf16.mxu0 0
        %327 = vmatpush1.bf16.msra.mxu0 0
        %328 = vmatprep.subr.bf16.mxu0 0
        %329 = vmatpush1.bf16.msra.mxu0 0
        %330 = vmatprep.subr.bf16.mxu0 0
        %331 = vmatpush1.bf16.msra.mxu0 0
        %332 = vmatprep.subr.bf16.mxu0 0
        %333 = vmatpush1.bf16.msra.mxu0 %v316
        %334 = vmatprep.subr.bf16.mxu0 0
        %335 = vmatpush2.bf16.msra.mxu0 0
        %336 = vmatprep.subr.bf16.mxu0 0
        %337 = vmatpush2.bf16.msra.mxu0 0
        %338 = vmatprep.subr.bf16.mxu0 0
        %339 = vmatpush2.bf16.msra.mxu0 0
        %340 = vmatprep.subr.bf16.mxu0 0
        %341 = vmatpush2.bf16.msra.mxu0 0
        %342 = vmatprep.subr.bf16.mxu0 0
        %343 = vmatpush2.bf16.msra.mxu0 0
        %344 = vmatprep.subr.bf16.mxu0 0
        %345 = vmatpush2.bf16.msra.mxu0 0
        %346 = vmatprep.subr.bf16.mxu0 0
        %347 = vmatpush2.bf16.msra.mxu0 0
        %348 = vmatprep.subr.bf16.mxu0 0
        %349 = vmatpush2.bf16.msra.mxu0 0
        %350 = vmatprep.mubr.bf16.mxu0 0
        %351 = vmatmul.mubr.bf16.gmra.mxu0 %v313
        %v352 = vpop.f32.mrf.mxu0
        %v353 = vadd.f32 0.0, %v352
        %v354 = vpop.f32.mrf.mxu0
        %v355 = vpop.f32.mrf.mxu0
        %v356 = vpop.f32.mrf.mxu0
        %357 = vdwg.mxu0
        %v358 = vadd.f32 %v304, %v353
        %v359 = vld [vmem:[%s2] sm:$0x1]
        %v361 = vlaneseq
        %v362 = vshrl.u32 %v361, 7
        %v363 = vsub.s32 0, %v362
        %v364 = vrot.slane %v359, %v363
        %v366 = vadd.f32 %v358, %v364
        %v367 = vmax.f32 %v366, 0.0
        %368 = vst [vmem:[%s187] sm:$0xff] %v367
        %s369 = sand.u32 %s109, 1
        %s370 = scalar_lea.sflag [#allocation3], %s369
        %s371 = sand.u32 %s109, 1
        %s372 = smul.addr %s371, 8
        %s373 = scalar_lea.vmem [#allocation2], %s372
        // Predicated region
        $region33: #{tpu_custom_call.1} parent=31 // pred_check
          %p374 = pneg %p119
        $region34: #{tpu_custom_call.1} parent=31 // pred_check_branch
          %376 = sbr.rel (%p374) target = $region36
        $region35: #{tpu_custom_call.1} parent=31 // pred_region
          %s378 = ssub.s32 128, 128
          %379 = vsyncadd %s370, %s378
          %s380 = sadd.s32 %s22, %s21
          %s381 = smul.addr %s380, 128
          %s382 = scalar_lea.hbm %s3, %s381
          %s384 = sshll.u32 %s373, 4
          %s385 = int_to_ptr.vmem [resolvable:$true] %s384
          %387 = dma.vmem_to_hbm [thread:$0]  %s385, 128, %s382, %s370
        $region36: #{tpu_custom_call.1} parent=31 // pred_fallthru
          _
      $region32: #{tpu_custom_call.1} parent=5 // pred_fallthru
        _
      %p388 = scmp.le.s32.totalorder 2, %s12
      // Predicated region
      $region37: #{tpu_custom_call.1} parent=5 // pred_check
        %p389 = pneg %p388
      $region38: #{tpu_custom_call.1} parent=5 // pred_check_branch
        %391 = sbr.rel (%p389) target = $region40
      $region39: #{tpu_custom_call.1} parent=5 // pred_region
        %s392 = ssub.s32 %s12, 2
        // Predicated region
        $region41: #{tpu_custom_call.1} parent=39 // pred_check
          %p393 = pneg %p125
        $region42: #{tpu_custom_call.1} parent=39 // pred_check_branch
          %395 = sbr.rel (%p393) target = $region44
        $region43: #{tpu_custom_call.1} parent=39 // pred_region
          %s396 = sand.u32 %s110, 1
          %s397 = scalar_lea.sflag [#allocation3], %s396
          %s398 = sand.u32 %s110, 1
          %s399 = smul.addr %s398, 8
          %s400 = scalar_lea.vmem [#allocation2], %s399
          %401 = dma.done %s397, 128
        $region44: #{tpu_custom_call.1} parent=39 // pred_fallthru
          _
      $region40: #{tpu_custom_call.1} parent=5 // pred_fallthru
        _
    $region6: #{tpu_custom_call.1} parent=1 // loop_footer
      %s16 = sadd.s32 1, %s12
    $region7: #{tpu_custom_call.1} parent=1 // loop_footer_branch
      %11 = sbr.rel target = $region3
    $region8: #{tpu_custom_call.1} parent=1 // loop_exit
      _
    %402 = vsyncpa [#allocation3], 1
    %s403 = scalar_lea.sflag [#allocation3], 1
    %404 = vsyncpa %s403, 1

</llo_original>
